<compile_context>
chip_gen: v5e
topology: v5e:2x2
jax: 0.10.0
libtpu: 0.0.40
codegen_flags: <defaults>
</compile_context>

<pallas_src>
import functools

import jax
import jax.numpy as jnp
from jax.experimental import pallas as pl
from jax.experimental.pallas import tpu as pltpu


def _fused_gcn_kernel(*refs, n_layers, n_rel):
    """Entire GCN stack in one kernel invocation (no grid).

    refs layout:
      refs[0]               x_ref      (N, D0)        f32
      refs[1]               adjc_ref   (N, R*N)       bf16  (A_r = cols r*N:(r+1)*N)
      refs[2 + 3*l + 0]     w_rel_ref  (R, Din, Dout) bf16
      refs[2 + 3*l + 1]     w_self_ref (Din, Dout)    bf16
      refs[2 + 3*l + 2]     b_ref      (1, Dout)      f32
      refs[-1]              o_ref      (N, D_last)    f32
    """
    x_ref, adjc_ref = refs[0], refs[1]
    o_ref = refs[-1]
    layer_refs = refs[2:-1]

    adjc = adjc_ref[...]                    # (N, R*N) bf16, VMEM-resident
    x = x_ref[...].astype(jnp.float32)      # running activation, f32

    for li in range(n_layers):
        w_rel_ref = layer_refs[3 * li + 0]
        w_self_ref = layer_refs[3 * li + 1]
        b_ref = layer_refs[3 * li + 2]

        if li != 0:
            # ReLU between layers (not before the first, not after the last),
            # applied once per layer on the resident activation.
            x = jnp.maximum(x, 0.0)

        xb = x.astype(jnp.bfloat16)         # bf16 MXU operands, f32 accumulate

        # Self-loop + bias (f32 accumulator).
        acc = jnp.dot(xb, w_self_ref[...],
                      preferred_element_type=jnp.float32) + b_ref[...]

        # Per-relation projections X @ W_r stacked along rows -> (R*N, Dout),
        # then the relation-sum message pass is a single wide MXU matmul:
        #   sum_r A_r @ (X W_r) = [A_1 | ... | A_R] @ [[X W_1]; ...; [X W_R]]
        h_stack = jnp.concatenate(
            [jnp.dot(xb, w_rel_ref[r],
                     preferred_element_type=jnp.float32).astype(jnp.bfloat16)
             for r in range(n_rel)],
            axis=0)
        acc = acc + jnp.dot(adjc, h_stack, preferred_element_type=jnp.float32)

        x = acc

    o_ref[...] = x.astype(o_ref.dtype)


def gcn_forward(node_init, adj, params_list):
    """node_init: (N, D0) f32, adj: (R, N, N) f32,
    params_list: [(W_rel (R, Din, Dout), W_self (Din, Dout), b (Dout,)), ...].
    Returns (N, D_last) f32 — matches the PyTorch GCN.forward semantics."""
    N, _ = node_init.shape
    R = adj.shape[0]

    # R == 0 guard: an empty relation set contributes zero messages; represent
    # it with one all-zero relation (and zero relation weights) so the kernel
    # always sees a valid, non-empty adjacency layout.
    if R == 0:
        adj = jnp.zeros((1, N, N), jnp.float32)
        params_list = [
            (jnp.zeros((1,) + tuple(w_self.shape), w_self.dtype), w_self, b)
            for (_w_rel, w_self, b) in params_list
        ]
        R = 1

    # A_r concatenated along lanes: adj_cols[:, r*N:(r+1)*N] == A_r (bf16).
    adj_cols = (jnp.transpose(adj, (1, 0, 2))
                .reshape(N, R * N)
                .astype(jnp.bfloat16))

    inputs = [node_init.astype(jnp.float32), adj_cols]
    flops = 0
    for (w_rel, w_self, b) in params_list:
        din, dout = w_self.shape
        inputs.append(w_rel.astype(jnp.bfloat16))
        inputs.append(w_self.astype(jnp.bfloat16))
        inputs.append(b.reshape(1, dout).astype(jnp.float32))
        # message matmul + (R per-relation + 1 self-loop) projections
        flops += 2 * N * (R * N) * dout + 2 * (R + 1) * N * din * dout

    d_last = params_list[-1][1].shape[1]
    bytes_accessed = int(sum(a.size * a.dtype.itemsize for a in inputs)
                         + N * d_last * 4)

    kernel = functools.partial(_fused_gcn_kernel,
                               n_layers=len(params_list), n_rel=R)

    return pl.pallas_call(
        kernel,
        out_shape=jax.ShapeDtypeStruct((N, d_last), jnp.float32),
        in_specs=[pl.BlockSpec(memory_space=pltpu.MemorySpace.VMEM)] * len(inputs),
        out_specs=pl.BlockSpec(memory_space=pltpu.MemorySpace.VMEM),
        cost_estimate=pl.CostEstimate(flops=int(flops), transcendentals=0,
                                      bytes_accessed=bytes_accessed),
    )(*inputs)


def init_params(key, layer_dims, R):
    """Deterministic glorot-uniform-ish init for each layer's
    (W_rel: (R, Din, Dout), W_self: (Din, Dout), b: (Dout,))."""
    params_list = []
    for (din, dout) in layer_dims:
        key, k1, k2 = jax.random.split(key, 3)
        scale = (6.0 / (din + dout)) ** 0.5
        w_rel = jax.random.uniform(k1, (R, din, dout), jnp.float32, -scale, scale)
        w_self = jax.random.uniform(k2, (din, dout), jnp.float32, -scale, scale)
        b = jnp.zeros((dout,), jnp.float32)
        params_list.append((w_rel, w_self, b))
    return params_list


def reference_forward(node_init, adj, params_list):
    """Pure-JAX f32 reference of the same semantics, for a sanity check."""
    out = node_init
    for i, (w_rel, w_self, b) in enumerate(params_list):
        if i != 0:
            out = jnp.maximum(out, 0.0)
        msg = jnp.einsum("rnm,md->rnd", adj, out)          # A_r @ X
        msg = jnp.einsum("rnd,rde->ne", msg, w_rel)        # sum_r (A_r X) W_r
        out = msg + out @ w_self + b[None, :]
    return out


if __name__ == "__main__":
    # Small synthetic configuration consistent with the module:
    #   |E| (total_ent) = 16 nodes, R = 2 relations,
    #   node_init feature dim = 8, gcn_layers = 2, emb_dim = 32, n_class = 4
    #   -> layer_sizes = [32, 4]
    N, R, D_IN = 16, 2, 8
    layer_sizes = [32, 4]
    layer_dims = []
    d = D_IN
    for l in layer_sizes:
        layer_dims.append((d, l))
        d = l

    key = jax.random.PRNGKey(0)
    key, kx, ka = jax.random.split(key, 3)

    node_init = jax.random.normal(kx, (N, D_IN), jnp.float32)
    # Random sparse-ish row-normalized adjacency per relation.
    adj_raw = (jax.random.uniform(ka, (R, N, N)) < 0.3).astype(jnp.float32)
    deg = jnp.clip(adj_raw.sum(axis=-1, keepdims=True), 1.0, None)
    adj = adj_raw / deg

    params_list = init_params(key, layer_dims, R)

    out = gcn_forward(node_init, adj, params_list)
    out = jax.block_until_ready(out)

    ref = reference_forward(node_init, adj, params_list)
    assert out.shape == (N, layer_sizes[-1])
    # bf16 MXU operands with f32 accumulation -> loose-but-safe tolerance
    # against the pure-f32 reference.
    assert jnp.allclose(out, ref, atol=5e-2, rtol=5e-2), "mismatch vs reference"

    print("KERNEL_OK")
</pallas_src>

<mosaic_0001>
module attributes {stable_mosaic.version = 11 : i64} {
  func.func @_fused_gcn_kernel(%arg0: memref<16x8xf32, #tpu.memory_space<vmem>>, %arg1: memref<16x32xbf16, #tpu.memory_space<vmem>>, %arg2: memref<2x8x32xbf16, #tpu.memory_space<vmem>>, %arg3: memref<8x32xbf16, #tpu.memory_space<vmem>>, %arg4: memref<1x32xf32, #tpu.memory_space<vmem>>, %arg5: memref<2x32x4xbf16, #tpu.memory_space<vmem>>, %arg6: memref<32x4xbf16, #tpu.memory_space<vmem>>, %arg7: memref<1x4xf32, #tpu.memory_space<vmem>>, %arg8: memref<16x4xf32, #tpu.memory_space<vmem>>) attributes {dimension_semantics = [], scalar_prefetch = 0 : i64, scratch_operands = 0 : i64, tpu.core_type = #tpu.core_type<tc>} {
    %c0 = arith.constant 0 : index
    %c0_0 = arith.constant 0 : index
    %0 = vector.load %arg1[%c0, %c0_0] : memref<16x32xbf16, #tpu.memory_space<vmem>>, vector<16x32xbf16>
    %c0_1 = arith.constant 0 : index
    %c0_2 = arith.constant 0 : index
    %1 = vector.load %arg0[%c0_1, %c0_2] : memref<16x8xf32, #tpu.memory_space<vmem>>, vector<16x8xf32>
    %2 = arith.truncf %1 : vector<16x8xf32> to vector<16x8xbf16>
    %c0_3 = arith.constant 0 : index
    %c0_4 = arith.constant 0 : index
    %3 = vector.load %arg3[%c0_3, %c0_4] : memref<8x32xbf16, #tpu.memory_space<vmem>>, vector<8x32xbf16>
    %cst = arith.constant dense<0.000000e+00> : vector<16x32xf32>
    %4 = tpu.matmul %2, %3, %cst {dimension_numbers = #tpu.dot_dimension_numbers<[1], [0], [0], [1], [0, 0, 1, 1], [], []>} : vector<16x8xbf16>, vector<8x32xbf16>, vector<16x32xf32> -> vector<16x32xf32>
    %c0_5 = arith.constant 0 : index
    %c0_6 = arith.constant 0 : index
    %5 = vector.load %arg4[%c0_5, %c0_6] : memref<1x32xf32, #tpu.memory_space<vmem>>, vector<1x32xf32>
    %6 = vector.broadcast %5 : vector<1x32xf32> to vector<16x32xf32>
    %7 = arith.addf %4, %6 : vector<16x32xf32>
    %c0_7 = arith.constant 0 : index
    %c0_8 = arith.constant 0 : index
    %c0_9 = arith.constant 0 : index
    %8 = vector.load %arg2[%c0_7, %c0_8, %c0_9] : memref<2x8x32xbf16, #tpu.memory_space<vmem>>, vector<1x8x32xbf16>
    %9 = vector.shape_cast %8 : vector<1x8x32xbf16> to vector<8x32xbf16>
    %cst_10 = arith.constant dense<0.000000e+00> : vector<16x32xf32>
    %10 = tpu.matmul %2, %9, %cst_10 {dimension_numbers = #tpu.dot_dimension_numbers<[1], [0], [0], [1], [0, 0, 1, 1], [], []>} : vector<16x8xbf16>, vector<8x32xbf16>, vector<16x32xf32> -> vector<16x32xf32>
    %11 = arith.truncf %10 : vector<16x32xf32> to vector<16x32xbf16>
    %c1 = arith.constant 1 : index
    %c0_11 = arith.constant 0 : index
    %c0_12 = arith.constant 0 : index
    %12 = vector.load %arg2[%c1, %c0_11, %c0_12] : memref<2x8x32xbf16, #tpu.memory_space<vmem>>, vector<1x8x32xbf16>
    %13 = vector.shape_cast %12 : vector<1x8x32xbf16> to vector<8x32xbf16>
    %cst_13 = arith.constant dense<0.000000e+00> : vector<16x32xf32>
    %14 = tpu.matmul %2, %13, %cst_13 {dimension_numbers = #tpu.dot_dimension_numbers<[1], [0], [0], [1], [0, 0, 1, 1], [], []>} : vector<16x8xbf16>, vector<8x32xbf16>, vector<16x32xf32> -> vector<16x32xf32>
    %15 = arith.truncf %14 : vector<16x32xf32> to vector<16x32xbf16>
    %16 = tpu.concatenate %11, %15 in 0 : vector<16x32xbf16>, vector<16x32xbf16> -> vector<32x32xbf16>
    %cst_14 = arith.constant dense<0.000000e+00> : vector<16x32xf32>
    %17 = tpu.matmul %0, %16, %cst_14 {dimension_numbers = #tpu.dot_dimension_numbers<[1], [0], [0], [1], [0, 0, 1, 1], [], []>} : vector<16x32xbf16>, vector<32x32xbf16>, vector<16x32xf32> -> vector<16x32xf32>
    %18 = arith.addf %7, %17 : vector<16x32xf32>
    %cst_15 = arith.constant 0.000000e+00 : f32
    %19 = vector.broadcast %cst_15 : f32 to vector<16x32xf32>
    %20 = arith.maximumf %18, %19 : vector<16x32xf32>
    %21 = arith.truncf %20 : vector<16x32xf32> to vector<16x32xbf16>
    %c0_16 = arith.constant 0 : index
    %c0_17 = arith.constant 0 : index
    %22 = vector.load %arg6[%c0_16, %c0_17] : memref<32x4xbf16, #tpu.memory_space<vmem>>, vector<32x4xbf16>
    %cst_18 = arith.constant dense<0.000000e+00> : vector<16x4xf32>
    %23 = tpu.matmul %21, %22, %cst_18 {dimension_numbers = #tpu.dot_dimension_numbers<[1], [0], [0], [1], [0, 0, 1, 1], [], []>} : vector<16x32xbf16>, vector<32x4xbf16>, vector<16x4xf32> -> vector<16x4xf32>
    %c0_19 = arith.constant 0 : index
    %c0_20 = arith.constant 0 : index
    %24 = vector.load %arg7[%c0_19, %c0_20] : memref<1x4xf32, #tpu.memory_space<vmem>>, vector<1x4xf32>
    %25 = vector.broadcast %24 : vector<1x4xf32> to vector<16x4xf32>
    %26 = arith.addf %23, %25 : vector<16x4xf32>
    %c0_21 = arith.constant 0 : index
    %c0_22 = arith.constant 0 : index
    %c0_23 = arith.constant 0 : index
    %27 = vector.load %arg5[%c0_21, %c0_22, %c0_23] : memref<2x32x4xbf16, #tpu.memory_space<vmem>>, vector<1x32x4xbf16>
    %28 = vector.shape_cast %27 : vector<1x32x4xbf16> to vector<32x4xbf16>
    %cst_24 = arith.constant dense<0.000000e+00> : vector<16x4xf32>
    %29 = tpu.matmul %21, %28, %cst_24 {dimension_numbers = #tpu.dot_dimension_numbers<[1], [0], [0], [1], [0, 0, 1, 1], [], []>} : vector<16x32xbf16>, vector<32x4xbf16>, vector<16x4xf32> -> vector<16x4xf32>
    %30 = arith.truncf %29 : vector<16x4xf32> to vector<16x4xbf16>
    %c1_25 = arith.constant 1 : index
    %c0_26 = arith.constant 0 : index
    %c0_27 = arith.constant 0 : index
    %31 = vector.load %arg5[%c1_25, %c0_26, %c0_27] : memref<2x32x4xbf16, #tpu.memory_space<vmem>>, vector<1x32x4xbf16>
    %32 = vector.shape_cast %31 : vector<1x32x4xbf16> to vector<32x4xbf16>
    %cst_28 = arith.constant dense<0.000000e+00> : vector<16x4xf32>
    %33 = tpu.matmul %21, %32, %cst_28 {dimension_numbers = #tpu.dot_dimension_numbers<[1], [0], [0], [1], [0, 0, 1, 1], [], []>} : vector<16x32xbf16>, vector<32x4xbf16>, vector<16x4xf32> -> vector<16x4xf32>
    %34 = arith.truncf %33 : vector<16x4xf32> to vector<16x4xbf16>
    %35 = tpu.concatenate %30, %34 in 0 : vector<16x4xbf16>, vector<16x4xbf16> -> vector<32x4xbf16>
    %cst_29 = arith.constant dense<0.000000e+00> : vector<16x4xf32>
    %36 = tpu.matmul %0, %35, %cst_29 {dimension_numbers = #tpu.dot_dimension_numbers<[1], [0], [0], [1], [0, 0, 1, 1], [], []>} : vector<16x32xbf16>, vector<32x4xbf16>, vector<16x4xf32> -> vector<16x4xf32>
    %37 = arith.addf %26, %36 : vector<16x4xf32>
    %c0_30 = arith.constant 0 : index
    %c0_31 = arith.constant 0 : index
    %38 = vector.load %arg8[%c0_30, %c0_31] : memref<16x4xf32, #tpu.memory_space<vmem>>, vector<16x4xf32>
    tpu.vector_store %arg8[%c0_30, %c0_31], %37 {strides = array<i32>} : memref<16x4xf32, #tpu.memory_space<vmem>>, vector<16x4xf32>,
    return
  }
}

</mosaic_0001>

<llo_original>
// kernel: tpu_custom_call.1
$region0: #{tpu_custom_call.1}
  #allocation0 [shape = 'u32[]', space=smem, size = 0x4, offset = 0x4, fixed_abs, tag = 'smem constant byte address 0x4 - core index']
  #allocation1 [shape = 'u32[72,128]{1,0:T(1,128)}', space=vmem, size = 0x9000, scoped, tag = 'internal scratch']
  %s0 = inlined_call_operand.vmem [shape: f32[16,8], index: 0, kind: input, shape index: {}]
  %s1 = inlined_call_operand.vmem [shape: bf16[16,32], index: 1, kind: input, shape index: {}]
  %s2 = inlined_call_operand.vmem [shape: bf16[2,8,32], index: 2, kind: input, shape index: {}]
  %s3 = inlined_call_operand.vmem [shape: bf16[8,32], index: 3, kind: input, shape index: {}]
  %s4 = inlined_call_operand.vmem [shape: f32[1,32], index: 4, kind: input, shape index: {}]
  %s5 = inlined_call_operand.vmem [shape: bf16[2,32,4], index: 5, kind: input, shape index: {}]
  %s6 = inlined_call_operand.vmem [shape: bf16[32,4], index: 6, kind: input, shape index: {}]
  %s7 = inlined_call_operand.vmem [shape: f32[1,4], index: 7, kind: input, shape index: {}]
  %s8 = inlined_call_operand.vmem [shape: f32[16,4], index: 8, kind: output, shape index: {}]
  %s9 = sld [smem:[#allocation0]]
  $region42: #{tpu_custom_call.1} parent=0
    _
  %s11 = ssub.s32 1, %s9
  %s12 = scalar_select 0, %s11, %s9
  // Predicated region
  $region2: #{tpu_custom_call.1} parent=0 // pred_check
    _
  $region3: #{tpu_custom_call.1} parent=0 // pred_check_branch
    %14 = sbr.rel (0) target = $region5
  $region4: #{tpu_custom_call.1} parent=0 // pred_region
    _
  $region5: #{tpu_custom_call.1} parent=0 // pred_fallthru
    _
  // Predicated region
  $region6: #{tpu_custom_call.1} parent=0 // pred_check
    _
  $region7: #{tpu_custom_call.1} parent=0 // pred_check_branch
    %16 = sbr.rel (0) target = $region9
  $region8: #{tpu_custom_call.1} parent=0 // pred_region
    _
  $region9: #{tpu_custom_call.1} parent=0 // pred_fallthru
    _
  // Predicated region
  $region10: #{tpu_custom_call.1} parent=0 // pred_check
    _
  $region11: #{tpu_custom_call.1} parent=0 // pred_check_branch
    %18 = sbr.rel (0) target = $region13
  $region12: #{tpu_custom_call.1} parent=0 // pred_region
    _
  $region13: #{tpu_custom_call.1} parent=0 // pred_fallthru
    _
  // Predicated region
  $region14: #{tpu_custom_call.1} parent=0 // pred_check
    _
  $region15: #{tpu_custom_call.1} parent=0 // pred_check_branch
    %20 = sbr.rel (0) target = $region17
  $region16: #{tpu_custom_call.1} parent=0 // pred_region
    _
  $region17: #{tpu_custom_call.1} parent=0 // pred_fallthru
    _
  // Predicated region
  $region18: #{tpu_custom_call.1} parent=0 // pred_check
    _
  $region19: #{tpu_custom_call.1} parent=0 // pred_check_branch
    %22 = sbr.rel (0) target = $region21
  $region20: #{tpu_custom_call.1} parent=0 // pred_region
    _
  $region21: #{tpu_custom_call.1} parent=0 // pred_fallthru
    _
  // Predicated region
  $region22: #{tpu_custom_call.1} parent=0 // pred_check
    _
  $region23: #{tpu_custom_call.1} parent=0 // pred_check_branch
    %24 = sbr.rel (0) target = $region25
  $region24: #{tpu_custom_call.1} parent=0 // pred_region
    _
  $region25: #{tpu_custom_call.1} parent=0 // pred_fallthru
    _
  // Predicated region
  $region26: #{tpu_custom_call.1} parent=0 // pred_check
    _
  $region27: #{tpu_custom_call.1} parent=0 // pred_check_branch
    %26 = sbr.rel (0) target = $region29
  $region28: #{tpu_custom_call.1} parent=0 // pred_region
    _
  $region29: #{tpu_custom_call.1} parent=0 // pred_fallthru
    _
  // Predicated region
  $region30: #{tpu_custom_call.1} parent=0 // pred_check
    _
  $region31: #{tpu_custom_call.1} parent=0 // pred_check_branch
    %28 = sbr.rel (0) target = $region33
  $region32: #{tpu_custom_call.1} parent=0 // pred_region
    _
  $region33: #{tpu_custom_call.1} parent=0 // pred_fallthru
    _
  %v30 = vld [vmem:[%s1] sm:$0xf]
  %v31 = vld [vmem:[%s1 + $0x4] sm:$0xf]
  %v32 = vld [vmem:[%s0] sm:$0xff]
  %v33 = vld [vmem:[%s0 + $0x8] sm:$0xff]
  %v34 = vpack.c.bf16 %v33, %v32
  %v35 = vld [vmem:[%s3] sm:$0xf]
  %v36 = vld [vmem:[%s4] sm:$0x1]
  %v38 = vperm.slane %v36, 0
  %vm40 = vcmask 64512
  %v42 = vsel %vm40, %v34, 0
  %vm44 = vcmask 1043456
  %v46 = vsel %vm44, %v35, 0
  %48 = vmatpush.bf16.msra.mxu0 0
  %49 = vmatpush.bf16.msra.mxu0 0
  %50 = vmatpush.bf16.msra.mxu0 0
  %51 = vmatpush.bf16.msra.mxu0 0
  %52 = vmatpush.bf16.msra.mxu0 0
  %53 = vmatpush.bf16.msra.mxu0 0
  %54 = vmatpush.bf16.msra.mxu0 0
  %55 = vmatpush.bf16.msra.mxu0 %v46
  %56 = vmatmul.bf16.gmra.mxu0 %v42
  %v57 = vpop.f32.mrf.mxu0
  %v58 = vadd.f32 %v38, %v57
  %v59 = vpop.f32.mrf.mxu0
  %v60 = vadd.f32 %v38, %v59
  %61 = vdwg.mxu0
  %v62 = vld [vmem:[%s2] sm:$0xf]
  %v64 = vsel %vm44, %v62, 0
  %66 = vmatpush.bf16.msra.mxu0 0
  %67 = vmatpush.bf16.msra.mxu0 0
  %68 = vmatpush.bf16.msra.mxu0 0
  %69 = vmatpush.bf16.msra.mxu0 0
  %70 = vmatpush.bf16.msra.mxu0 0
  %71 = vmatpush.bf16.msra.mxu0 0
  %72 = vmatpush.bf16.msra.mxu0 0
  %73 = vmatpush.bf16.msra.mxu0 %v64
  %74 = vmatmul.bf16.gmra.mxu0 %v42
  %v75 = vpop.f32.mrf.mxu0
  %v76 = vadd.f32 0.0, %v75
  %v77 = vpop.f32.mrf.mxu0
  %v78 = vadd.f32 0.0, %v77
  %79 = vdwg.mxu0
  %v80 = vpack.c.bf16 %v76, %v76
  %v81 = vpack.c.bf16 %v78, %v78
  %s82 = scalar_lea.vmem %s2, 4
  %v83 = vld [vmem:[%s82] sm:$0xf]
  %v85 = vsel %vm44, %v83, 0
  %87 = vmatpush.bf16.msra.mxu0 0
  %88 = vmatpush.bf16.msra.mxu0 0
  %89 = vmatpush.bf16.msra.mxu0 0
  %90 = vmatpush.bf16.msra.mxu0 0
  %91 = vmatpush.bf16.msra.mxu0 0
  %92 = vmatpush.bf16.msra.mxu0 0
  %93 = vmatpush.bf16.msra.mxu0 0
  %94 = vmatpush.bf16.msra.mxu0 %v85
  %95 = vmatmul.bf16.gmra.mxu0 %v42
  %v96 = vpop.f32.mrf.mxu0
  %v97 = vadd.f32 0.0, %v96
  %v98 = vpop.f32.mrf.mxu0
  %v99 = vadd.f32 0.0, %v98
  %100 = vdwg.mxu0
  %v101 = vpack.c.bf16 %v97, %v97
  %v102 = vpack.c.bf16 %v99, %v99
  %v105 = vunpack.c.l.b16 %v80
  %v106 = vunpack.c.l.b16 %v81
  %v107 = vpack.c.b16 %v106, %v105
  %v111 = vunpack.c.l.b16 %v101
  %v112 = vunpack.c.l.b16 %v102
  %v113 = vpack.c.b16 %v112, %v111
  %v117 = vunpack.c.l.b16 %v30
  %v118 = vunpack.c.l.b16 %v31
  %v119 = vpack.c.b16 %v118, %v117
  %vm120 = vcmask 261120
  %v122 = vsel %vm120, %v119, 0
  %124 = vmatpush.bf16.msra.mxu0 0
  %125 = vmatpush.bf16.msra.mxu0 0
  %126 = vmatpush.bf16.msra.mxu0 0
  %127 = vmatpush.bf16.msra.mxu0 0
  %128 = vmatpush.bf16.msra.mxu0 0
  %129 = vmatpush.bf16.msra.mxu0 0
  %130 = vmatpush.bf16.msra.mxu0 %v113
  %131 = vmatpush.bf16.msra.mxu0 %v107
  %132 = vmatmul.bf16.gmra.mxu0 %v122
  %v133 = vpop.f32.mrf.mxu0
  %v134 = vadd.f32 0.0, %v133
  %v135 = vpop.f32.mrf.mxu0
  %v136 = vadd.f32 0.0, %v135
  %137 = vdwg.mxu0
  %v138 = vadd.f32 %v58, %v134
  %v139 = vadd.f32 %v60, %v136
  %v140 = vmax.f32 %v138, 0.0
  %v141 = vmax.f32 %v139, 0.0
  %v142 = vpack.c.bf16 %v141, %v140
  %v143 = vld [vmem:[%s6] sm:$0xf]
  %v144 = vld [vmem:[%s6 + $0x4] sm:$0xf]
  %v145 = vld [vmem:[%s6 + $0x8] sm:$0xf]
  %v146 = vld [vmem:[%s6 + $0xc] sm:$0xf]
  %v147 = vld [vmem:[%s7] sm:$0x1]
  %v149 = vperm.slane %v147, 0
  %v155 = vunpack.c.l.b16 %v143
  %v156 = vunpack.c.l.b16 %v144
  %v157 = vunpack.c.l.b16 %v145
  %v158 = vunpack.c.l.b16 %v146
  %v159 = vpack.c.b16 %v156, %v155
  %v160 = vpack.c.b16 %v158, %v157
  %v164 = vsel %vm120, %v142, 0
  %166 = vmatpush.bf16.msra.mxu0 0
  %167 = vmatpush.bf16.msra.mxu0 0
  %168 = vmatpush.bf16.msra.mxu0 0
  %169 = vmatpush.bf16.msra.mxu0 0
  %170 = vmatpush.bf16.msra.mxu0 0
  %171 = vmatpush.bf16.msra.mxu0 0
  %172 = vmatpush.bf16.msra.mxu0 %v160
  %173 = vmatpush.bf16.msra.mxu0 %v159
  %174 = vmatmul.bf16.gmra.mxu0 %v164
  %v175 = vpop.f32.mrf.mxu0
  %v176 = vadd.f32 %v149, %v175
  %v177 = vpop.f32.mrf.mxu0
  %v178 = vadd.f32 %v149, %v177
  %179 = vdwg.mxu0
  %v180 = vld [vmem:[%s5] sm:$0xf]
  %v181 = vld [vmem:[%s5 + $0x4] sm:$0xf]
  %v182 = vld [vmem:[%s5 + $0x8] sm:$0xf]
  %v183 = vld [vmem:[%s5 + $0xc] sm:$0xf]
  %v188 = vunpack.c.l.b16 %v180
  %v189 = vunpack.c.l.b16 %v181
  %v190 = vunpack.c.l.b16 %v182
  %v191 = vunpack.c.l.b16 %v183
  %v192 = vpack.c.b16 %v189, %v188
  %v193 = vpack.c.b16 %v191, %v190
  %196 = vmatpush.bf16.msra.mxu0 0
  %197 = vmatpush.bf16.msra.mxu0 0
  %198 = vmatpush.bf16.msra.mxu0 0
  %199 = vmatpush.bf16.msra.mxu0 0
  %200 = vmatpush.bf16.msra.mxu0 0
  %201 = vmatpush.bf16.msra.mxu0 0
  %202 = vmatpush.bf16.msra.mxu0 %v193
  %203 = vmatpush.bf16.msra.mxu0 %v192
  %204 = vmatmul.bf16.gmra.mxu0 %v164
  %v205 = vpop.f32.mrf.mxu0
  %v206 = vadd.f32 0.0, %v205
  %v207 = vpop.f32.mrf.mxu0
  %v208 = vadd.f32 0.0, %v207
  %209 = vdwg.mxu0
  %v210 = vpack.c.bf16 %v206, %v206
  %v211 = vpack.c.bf16 %v208, %v208
  %s212 = scalar_lea.vmem %s5, 16
  %v213 = vld [vmem:[%s212] sm:$0xf]
  %v214 = vld [vmem:[%s212 + $0x4] sm:$0xf]
  %v215 = vld [vmem:[%s212 + $0x8] sm:$0xf]
  %v216 = vld [vmem:[%s212 + $0xc] sm:$0xf]
  %v221 = vunpack.c.l.b16 %v213
  %v222 = vunpack.c.l.b16 %v214
  %v223 = vunpack.c.l.b16 %v215
  %v224 = vunpack.c.l.b16 %v216
  %v225 = vpack.c.b16 %v222, %v221
  %v226 = vpack.c.b16 %v224, %v223
  %229 = vmatpush.bf16.msra.mxu0 0
  %230 = vmatpush.bf16.msra.mxu0 0
  %231 = vmatpush.bf16.msra.mxu0 0
  %232 = vmatpush.bf16.msra.mxu0 0
  %233 = vmatpush.bf16.msra.mxu0 0
  %234 = vmatpush.bf16.msra.mxu0 0
  %235 = vmatpush.bf16.msra.mxu0 %v226
  %236 = vmatpush.bf16.msra.mxu0 %v225
  %237 = vmatmul.bf16.gmra.mxu0 %v164
  %v238 = vpop.f32.mrf.mxu0
  %v239 = vadd.f32 0.0, %v238
  %v240 = vpop.f32.mrf.mxu0
  %v241 = vadd.f32 0.0, %v240
  %242 = vdwg.mxu0
  %v243 = vpack.c.bf16 %v239, %v239
  %v244 = vpack.c.bf16 %v241, %v241
  %v247 = vunpack.c.l.b16 %v210
  %v248 = vunpack.c.l.b16 %v211
  %v249 = vpack.c.b16 %v248, %v247
  %v253 = vunpack.c.l.b16 %v243
  %v254 = vunpack.c.l.b16 %v244
  %v255 = vpack.c.b16 %v254, %v253
  %257 = vmatpush.bf16.msra.mxu0 0
  %258 = vmatpush.bf16.msra.mxu0 0
  %259 = vmatpush.bf16.msra.mxu0 0
  %260 = vmatpush.bf16.msra.mxu0 0
  %261 = vmatpush.bf16.msra.mxu0 0
  %262 = vmatpush.bf16.msra.mxu0 0
  %263 = vmatpush.bf16.msra.mxu0 %v255
  %264 = vmatpush.bf16.msra.mxu0 %v249
  %265 = vmatmul.bf16.gmra.mxu0 %v122
  %v266 = vpop.f32.mrf.mxu0
  %v267 = vadd.f32 0.0, %v266
  %v268 = vpop.f32.mrf.mxu0
  %v269 = vadd.f32 0.0, %v268
  %270 = vdwg.mxu0
  %v271 = vadd.f32 %v176, %v267
  %v272 = vadd.f32 %v178, %v269
  %vm273 = vcmask 31744
  %274 = vst.msk [vmem:[%s8] sm:$0xff] %vm273, %v271
  %275 = vst.msk [vmem:[%s8 + $0x8] sm:$0xff] %vm273, %v272
  // Predicated region
  $region34: #{tpu_custom_call.1} parent=0 // pred_check
    _
  $region35: #{tpu_custom_call.1} parent=0 // pred_check_branch
    %277 = sbr.rel (0) target = $region37
  $region36: #{tpu_custom_call.1} parent=0 // pred_region
    _
  $region37: #{tpu_custom_call.1} parent=0 // pred_fallthru
    _
  // Predicated region
  $region38: #{tpu_custom_call.1} parent=0 // pred_check
    _
  $region39: #{tpu_custom_call.1} parent=0 // pred_check_branch
    %279 = sbr.rel (0) target = $region41
  $region40: #{tpu_custom_call.1} parent=0 // pred_region
    _
  $region41: #{tpu_custom_call.1} parent=0 // pred_fallthru
    _

</llo_original>
